<compile_context>
chip_gen: v7x
topology: tpu7x:2x2x1
jax: 0.10.0
libtpu: 0.0.40
codegen_flags: <defaults>
</compile_context>

<pallas_src>
import jax
import jax.numpy as jnp
from jax.experimental import pallas as pl
from jax.experimental.pallas import tpu as pltpu

LANE = 128                     # padded feature width of every layer
N_LAYERS = 8
ELU_LAYERS = (0, 1, 2, 4, 5, 6)  # layers followed by ELU (not the encoder/decoder tails)


def _layer_dims(input_size=10, hidden_size=10):
    # True (unpadded) layer dimensions of the PyTorch module, weights as (in, out).
    return [
        # Encoder
        (input_size, 64), (64, 128), (128, 64), (64, hidden_size),
        # Decoder
        (hidden_size, 64), (64, 128), (128, 64), (64, input_size),
    ]


def _elu_f32(v):
    # nn.ELU(alpha=1): v if v > 0 else exp(v) - 1.  exp() is taken on min(v, 0) so the
    # (discarded) positive branch never evaluates an inf; any precision loss near 0 is
    # far below bf16 matmul noise.  EUP slot -> effectively free next to the MXU path.
    return jnp.where(v > 0, v, jnp.exp(jnp.minimum(v, 0.0)) - 1.0)


# -----------------------------------------------------------------------------
# Kernel: one (TB, 128) batch tile of activations flows through all 8 layers.
# Weight/bias slabs are whole-array blocks with constant index_maps, so they are
# DMA'd once and stay VMEM-resident across the batch grid.
# -----------------------------------------------------------------------------
def _autoencoder_kernel(x_ref, w_ref, b_ref, out_ref):
    h_bf16 = x_ref[...]                                    # (TB, 128) bf16
    acc = None
    for layer in range(N_LAYERS):                          # static unrolled 8-layer MLP
        acc = jnp.dot(h_bf16, w_ref[layer],                # bf16 x bf16 -> f32 on MXU
                      preferred_element_type=jnp.float32)
        acc = acc + b_ref[pl.ds(layer, 1), :]              # f32 bias, (1, 128) broadcast
        if layer in ELU_LAYERS:
            acc = _elu_f32(acc)
        h_bf16 = acc.astype(jnp.bfloat16)                  # narrow only for the next MXU pass
    out_ref[...] = acc.astype(out_ref.dtype)               # final layer kept in f32


# -----------------------------------------------------------------------------
# Wrapper: parameter packing, lane/batch padding, batch-parallel grid.
# -----------------------------------------------------------------------------
def _round_up(n, m):
    return ((n + m - 1) // m) * m


def pack_params(params):
    """Pack 8 (w:(in,out) f32, b:(out,) f32) layers into lane-dense slabs.

    Returns (w_slab: (8,128,128) bf16, b_slab: (8,128) f32), zero padded so padded
    lanes stay exactly zero through every layer (ELU(0) = 0).
    """
    w_slab = jnp.zeros((N_LAYERS, LANE, LANE), jnp.float32)
    b_slab = jnp.zeros((N_LAYERS, LANE), jnp.float32)
    for i, (w, b) in enumerate(params):
        fi, fo = w.shape
        w_slab = w_slab.at[i, :fi, :fo].set(w)
        b_slab = b_slab.at[i, :fo].set(b.reshape(-1))
    return w_slab.astype(jnp.bfloat16), b_slab             # biases stay f32


def autoencoder_forward(x, params, *, max_batch_tile=512):
    B, F = x.shape
    w_slab, b_slab = pack_params(params)

    # Batch tile: multiple of 8 sublanes; capped so 2x(TB,128) activation buffers plus
    # the ~0.3 MB of packed params sit far under v7x's 32 MiB scoped-VMEM default.
    TB = min(_round_up(B, 8), max_batch_tile)
    B_pad = _round_up(B, TB)

    x_pad = jnp.zeros((B_pad, LANE), jnp.bfloat16).at[:B, :F].set(
        x.astype(jnp.bfloat16))

    flops = 2 * B_pad * N_LAYERS * LANE * LANE
    transcendentals = B_pad * len(ELU_LAYERS) * LANE
    bytes_accessed = (x_pad.size * x_pad.dtype.itemsize
                      + w_slab.size * w_slab.dtype.itemsize
                      + b_slab.size * b_slab.dtype.itemsize
                      + B_pad * LANE * 4)                  # f32 output

    out = pl.pallas_call(
        _autoencoder_kernel,
        out_shape=jax.ShapeDtypeStruct((B_pad, LANE), jnp.float32),
        grid=(B_pad // TB,),
        in_specs=[
            pl.BlockSpec((TB, LANE), lambda i: (i, 0)),                  # activations
            pl.BlockSpec((N_LAYERS, LANE, LANE), lambda i: (0, 0, 0)),   # weights (resident)
            pl.BlockSpec((N_LAYERS, LANE), lambda i: (0, 0)),            # biases  (resident)
        ],
        out_specs=pl.BlockSpec((TB, LANE), lambda i: (i, 0)),
        compiler_params=pltpu.CompilerParams(
            dimension_semantics=("parallel",)),              # v7x: both TCs for large B
        cost_estimate=pl.CostEstimate(
            flops=flops,
            transcendentals=transcendentals,
            bytes_accessed=bytes_accessed),
    )(x_pad, w_slab, b_slab)

    return out[:B, :F]


# -----------------------------------------------------------------------------
# Deterministic parameter init matching nn.Linear defaults:
# U(-1/sqrt(fan_in), 1/sqrt(fan_in)), weights stored transposed as (in, out).
# -----------------------------------------------------------------------------
def init_params(key, input_size=10, hidden_size=10):
    params = []
    for (fan_in, fan_out) in _layer_dims(input_size, hidden_size):
        key, kw, kb = jax.random.split(key, 3)
        bound = 1.0 / float(fan_in) ** 0.5
        w = jax.random.uniform(kw, (fan_in, fan_out), jnp.float32, -bound, bound)
        b = jax.random.uniform(kb, (fan_out,), jnp.float32, -bound, bound)
        params.append((w, b))
    return params


# Pure-JAX references for correctness checks.
def reference_forward_f32(x, params):
    h = x
    for i, (w, b) in enumerate(params):
        h = h @ w + b[None, :]
        if i in ELU_LAYERS:
            h = _elu_f32(h)
    return h


def reference_forward_bf16(x, params):
    """Mirrors the kernel's precision recipe: bf16 operands, f32 accumulation."""
    h = x.astype(jnp.bfloat16)
    acc = None
    for i, (w, b) in enumerate(params):
        acc = jnp.dot(h, w.astype(jnp.bfloat16),
                      preferred_element_type=jnp.float32) + b[None, :]
        if i in ELU_LAYERS:
            acc = _elu_f32(acc)
        h = acc.astype(jnp.bfloat16)
    return acc


if __name__ == "__main__":
    key = jax.random.PRNGKey(0)
    key, kx = jax.random.split(key)

    # B=12 exercises batch padding (-> 16 rows); features 10 exercise lane padding (-> 128).
    B, input_size, hidden_size = 12, 10, 10
    x = jax.random.normal(kx, (B, input_size), jnp.float32)
    params = init_params(key, input_size=input_size, hidden_size=hidden_size)

    out = jax.block_until_ready(autoencoder_forward(x, params))
    assert out.shape == (B, input_size), out.shape

    ref_bf16 = reference_forward_bf16(x, params)
    ref_f32 = reference_forward_f32(x, params)
    err_bf16 = float(jnp.max(jnp.abs(out - ref_bf16)))
    err_f32 = float(jnp.max(jnp.abs(out - ref_f32)))
    assert err_bf16 < 5e-3, f"max abs err vs bf16-matched reference = {err_bf16}"
    assert err_f32 < 5e-2, f"max abs err vs f32 reference = {err_f32}"

    print("KERNEL_OK")
</pallas_src>

<mosaic_0001>
module attributes {stable_mosaic.version = 11 : i64} {
  func.func @_autoencoder_kernel(%arg0: i32, %arg1: memref<16x128xbf16, #tpu.memory_space<vmem>>, %arg2: memref<8x128x128xbf16, #tpu.memory_space<vmem>>, %arg3: memref<8x128xf32, #tpu.memory_space<vmem>>, %arg4: memref<16x128xf32, #tpu.memory_space<vmem>>) attributes {dimension_semantics = [#tpu.dimension_semantics<parallel>], iteration_bounds = array<i64: 1>, scalar_prefetch = 0 : i64, scratch_operands = 0 : i64, tpu.core_type = #tpu.core_type<tc>, window_params = [{transform_indices = @transform_0, window_bounds = array<i64: 16, 128>}, {pipeline_mode = #tpu.pipeline_mode<synchronous>, transform_indices = @transform_1, window_bounds = array<i64: 8, 128, 128>}, {pipeline_mode = #tpu.pipeline_mode<synchronous>, transform_indices = @transform_2, window_bounds = array<i64: 8, 128>}, {transform_indices = @transform_3, window_bounds = array<i64: 16, 128>}]} {
    %c0 = arith.constant 0 : index
    %c0_0 = arith.constant 0 : index
    %0 = vector.load %arg1[%c0, %c0_0] : memref<16x128xbf16, #tpu.memory_space<vmem>>, vector<16x128xbf16>
    %c0_1 = arith.constant 0 : index
    %c0_2 = arith.constant 0 : index
    %c0_3 = arith.constant 0 : index
    %1 = vector.load %arg2[%c0_1, %c0_2, %c0_3] : memref<8x128x128xbf16, #tpu.memory_space<vmem>>, vector<1x128x128xbf16>
    %2 = vector.shape_cast %1 : vector<1x128x128xbf16> to vector<128x128xbf16>
    %cst = arith.constant dense<0.000000e+00> : vector<16x128xf32>
    %3 = tpu.matmul %0, %2, %cst {dimension_numbers = #tpu.dot_dimension_numbers<[1], [0], [0], [1], [0, 0, 1, 1], [], []>} : vector<16x128xbf16>, vector<128x128xbf16>, vector<16x128xf32> -> vector<16x128xf32>
    %c0_4 = arith.constant 0 : index
    %c0_5 = arith.constant 0 : index
    %4 = vector.load %arg3[%c0_4, %c0_5] : memref<8x128xf32, #tpu.memory_space<vmem>>, vector<1x128xf32>
    %5 = vector.broadcast %4 : vector<1x128xf32> to vector<16x128xf32>
    %6 = arith.addf %3, %5 : vector<16x128xf32>
    %cst_6 = arith.constant 0.000000e+00 : f32
    %7 = vector.broadcast %cst_6 : f32 to vector<16x128xf32>
    %8 = arith.cmpf ogt, %6, %7 : vector<16x128xf32>
    %cst_7 = arith.constant 0.000000e+00 : f32
    %9 = vector.broadcast %cst_7 : f32 to vector<16x128xf32>
    %10 = arith.minimumf %6, %9 : vector<16x128xf32>
    %11 = math.exp %10 : vector<16x128xf32>
    %cst_8 = arith.constant 1.000000e+00 : f32
    %12 = vector.broadcast %cst_8 : f32 to vector<16x128xf32>
    %13 = arith.subf %11, %12 : vector<16x128xf32>
    %14 = arith.select %8, %6, %13 : vector<16x128xi1>, vector<16x128xf32>
    %15 = arith.truncf %14 : vector<16x128xf32> to vector<16x128xbf16>
    %c1 = arith.constant 1 : index
    %c0_9 = arith.constant 0 : index
    %c0_10 = arith.constant 0 : index
    %16 = vector.load %arg2[%c1, %c0_9, %c0_10] : memref<8x128x128xbf16, #tpu.memory_space<vmem>>, vector<1x128x128xbf16>
    %17 = vector.shape_cast %16 : vector<1x128x128xbf16> to vector<128x128xbf16>
    %cst_11 = arith.constant dense<0.000000e+00> : vector<16x128xf32>
    %18 = tpu.matmul %15, %17, %cst_11 {dimension_numbers = #tpu.dot_dimension_numbers<[1], [0], [0], [1], [0, 0, 1, 1], [], []>} : vector<16x128xbf16>, vector<128x128xbf16>, vector<16x128xf32> -> vector<16x128xf32>
    %c1_12 = arith.constant 1 : index
    %c0_13 = arith.constant 0 : index
    %19 = vector.load %arg3[%c1_12, %c0_13] : memref<8x128xf32, #tpu.memory_space<vmem>>, vector<1x128xf32>
    %20 = vector.broadcast %19 : vector<1x128xf32> to vector<16x128xf32>
    %21 = arith.addf %18, %20 : vector<16x128xf32>
    %cst_14 = arith.constant 0.000000e+00 : f32
    %22 = vector.broadcast %cst_14 : f32 to vector<16x128xf32>
    %23 = arith.cmpf ogt, %21, %22 : vector<16x128xf32>
    %cst_15 = arith.constant 0.000000e+00 : f32
    %24 = vector.broadcast %cst_15 : f32 to vector<16x128xf32>
    %25 = arith.minimumf %21, %24 : vector<16x128xf32>
    %26 = math.exp %25 : vector<16x128xf32>
    %cst_16 = arith.constant 1.000000e+00 : f32
    %27 = vector.broadcast %cst_16 : f32 to vector<16x128xf32>
    %28 = arith.subf %26, %27 : vector<16x128xf32>
    %29 = arith.select %23, %21, %28 : vector<16x128xi1>, vector<16x128xf32>
    %30 = arith.truncf %29 : vector<16x128xf32> to vector<16x128xbf16>
    %c2 = arith.constant 2 : index
    %c0_17 = arith.constant 0 : index
    %c0_18 = arith.constant 0 : index
    %31 = vector.load %arg2[%c2, %c0_17, %c0_18] : memref<8x128x128xbf16, #tpu.memory_space<vmem>>, vector<1x128x128xbf16>
    %32 = vector.shape_cast %31 : vector<1x128x128xbf16> to vector<128x128xbf16>
    %cst_19 = arith.constant dense<0.000000e+00> : vector<16x128xf32>
    %33 = tpu.matmul %30, %32, %cst_19 {dimension_numbers = #tpu.dot_dimension_numbers<[1], [0], [0], [1], [0, 0, 1, 1], [], []>} : vector<16x128xbf16>, vector<128x128xbf16>, vector<16x128xf32> -> vector<16x128xf32>
    %c2_20 = arith.constant 2 : index
    %c0_21 = arith.constant 0 : index
    %34 = vector.load %arg3[%c2_20, %c0_21] : memref<8x128xf32, #tpu.memory_space<vmem>>, vector<1x128xf32>
    %35 = vector.broadcast %34 : vector<1x128xf32> to vector<16x128xf32>
    %36 = arith.addf %33, %35 : vector<16x128xf32>
    %cst_22 = arith.constant 0.000000e+00 : f32
    %37 = vector.broadcast %cst_22 : f32 to vector<16x128xf32>
    %38 = arith.cmpf ogt, %36, %37 : vector<16x128xf32>
    %cst_23 = arith.constant 0.000000e+00 : f32
    %39 = vector.broadcast %cst_23 : f32 to vector<16x128xf32>
    %40 = arith.minimumf %36, %39 : vector<16x128xf32>
    %41 = math.exp %40 : vector<16x128xf32>
    %cst_24 = arith.constant 1.000000e+00 : f32
    %42 = vector.broadcast %cst_24 : f32 to vector<16x128xf32>
    %43 = arith.subf %41, %42 : vector<16x128xf32>
    %44 = arith.select %38, %36, %43 : vector<16x128xi1>, vector<16x128xf32>
    %45 = arith.truncf %44 : vector<16x128xf32> to vector<16x128xbf16>
    %c3 = arith.constant 3 : index
    %c0_25 = arith.constant 0 : index
    %c0_26 = arith.constant 0 : index
    %46 = vector.load %arg2[%c3, %c0_25, %c0_26] : memref<8x128x128xbf16, #tpu.memory_space<vmem>>, vector<1x128x128xbf16>
    %47 = vector.shape_cast %46 : vector<1x128x128xbf16> to vector<128x128xbf16>
    %cst_27 = arith.constant dense<0.000000e+00> : vector<16x128xf32>
    %48 = tpu.matmul %45, %47, %cst_27 {dimension_numbers = #tpu.dot_dimension_numbers<[1], [0], [0], [1], [0, 0, 1, 1], [], []>} : vector<16x128xbf16>, vector<128x128xbf16>, vector<16x128xf32> -> vector<16x128xf32>
    %c3_28 = arith.constant 3 : index
    %c0_29 = arith.constant 0 : index
    %49 = vector.load %arg3[%c3_28, %c0_29] : memref<8x128xf32, #tpu.memory_space<vmem>>, vector<1x128xf32>
    %50 = vector.broadcast %49 : vector<1x128xf32> to vector<16x128xf32>
    %51 = arith.addf %48, %50 : vector<16x128xf32>
    %52 = arith.truncf %51 : vector<16x128xf32> to vector<16x128xbf16>
    %c4 = arith.constant 4 : index
    %c0_30 = arith.constant 0 : index
    %c0_31 = arith.constant 0 : index
    %53 = vector.load %arg2[%c4, %c0_30, %c0_31] : memref<8x128x128xbf16, #tpu.memory_space<vmem>>, vector<1x128x128xbf16>
    %54 = vector.shape_cast %53 : vector<1x128x128xbf16> to vector<128x128xbf16>
    %cst_32 = arith.constant dense<0.000000e+00> : vector<16x128xf32>
    %55 = tpu.matmul %52, %54, %cst_32 {dimension_numbers = #tpu.dot_dimension_numbers<[1], [0], [0], [1], [0, 0, 1, 1], [], []>} : vector<16x128xbf16>, vector<128x128xbf16>, vector<16x128xf32> -> vector<16x128xf32>
    %c4_33 = arith.constant 4 : index
    %c0_34 = arith.constant 0 : index
    %56 = vector.load %arg3[%c4_33, %c0_34] : memref<8x128xf32, #tpu.memory_space<vmem>>, vector<1x128xf32>
    %57 = vector.broadcast %56 : vector<1x128xf32> to vector<16x128xf32>
    %58 = arith.addf %55, %57 : vector<16x128xf32>
    %cst_35 = arith.constant 0.000000e+00 : f32
    %59 = vector.broadcast %cst_35 : f32 to vector<16x128xf32>
    %60 = arith.cmpf ogt, %58, %59 : vector<16x128xf32>
    %cst_36 = arith.constant 0.000000e+00 : f32
    %61 = vector.broadcast %cst_36 : f32 to vector<16x128xf32>
    %62 = arith.minimumf %58, %61 : vector<16x128xf32>
    %63 = math.exp %62 : vector<16x128xf32>
    %cst_37 = arith.constant 1.000000e+00 : f32
    %64 = vector.broadcast %cst_37 : f32 to vector<16x128xf32>
    %65 = arith.subf %63, %64 : vector<16x128xf32>
    %66 = arith.select %60, %58, %65 : vector<16x128xi1>, vector<16x128xf32>
    %67 = arith.truncf %66 : vector<16x128xf32> to vector<16x128xbf16>
    %c5 = arith.constant 5 : index
    %c0_38 = arith.constant 0 : index
    %c0_39 = arith.constant 0 : index
    %68 = vector.load %arg2[%c5, %c0_38, %c0_39] : memref<8x128x128xbf16, #tpu.memory_space<vmem>>, vector<1x128x128xbf16>
    %69 = vector.shape_cast %68 : vector<1x128x128xbf16> to vector<128x128xbf16>
    %cst_40 = arith.constant dense<0.000000e+00> : vector<16x128xf32>
    %70 = tpu.matmul %67, %69, %cst_40 {dimension_numbers = #tpu.dot_dimension_numbers<[1], [0], [0], [1], [0, 0, 1, 1], [], []>} : vector<16x128xbf16>, vector<128x128xbf16>, vector<16x128xf32> -> vector<16x128xf32>
    %c5_41 = arith.constant 5 : index
    %c0_42 = arith.constant 0 : index
    %71 = vector.load %arg3[%c5_41, %c0_42] : memref<8x128xf32, #tpu.memory_space<vmem>>, vector<1x128xf32>
    %72 = vector.broadcast %71 : vector<1x128xf32> to vector<16x128xf32>
    %73 = arith.addf %70, %72 : vector<16x128xf32>
    %cst_43 = arith.constant 0.000000e+00 : f32
    %74 = vector.broadcast %cst_43 : f32 to vector<16x128xf32>
    %75 = arith.cmpf ogt, %73, %74 : vector<16x128xf32>
    %cst_44 = arith.constant 0.000000e+00 : f32
    %76 = vector.broadcast %cst_44 : f32 to vector<16x128xf32>
    %77 = arith.minimumf %73, %76 : vector<16x128xf32>
    %78 = math.exp %77 : vector<16x128xf32>
    %cst_45 = arith.constant 1.000000e+00 : f32
    %79 = vector.broadcast %cst_45 : f32 to vector<16x128xf32>
    %80 = arith.subf %78, %79 : vector<16x128xf32>
    %81 = arith.select %75, %73, %80 : vector<16x128xi1>, vector<16x128xf32>
    %82 = arith.truncf %81 : vector<16x128xf32> to vector<16x128xbf16>
    %c6 = arith.constant 6 : index
    %c0_46 = arith.constant 0 : index
    %c0_47 = arith.constant 0 : index
    %83 = vector.load %arg2[%c6, %c0_46, %c0_47] : memref<8x128x128xbf16, #tpu.memory_space<vmem>>, vector<1x128x128xbf16>
    %84 = vector.shape_cast %83 : vector<1x128x128xbf16> to vector<128x128xbf16>
    %cst_48 = arith.constant dense<0.000000e+00> : vector<16x128xf32>
    %85 = tpu.matmul %82, %84, %cst_48 {dimension_numbers = #tpu.dot_dimension_numbers<[1], [0], [0], [1], [0, 0, 1, 1], [], []>} : vector<16x128xbf16>, vector<128x128xbf16>, vector<16x128xf32> -> vector<16x128xf32>
    %c6_49 = arith.constant 6 : index
    %c0_50 = arith.constant 0 : index
    %86 = vector.load %arg3[%c6_49, %c0_50] : memref<8x128xf32, #tpu.memory_space<vmem>>, vector<1x128xf32>
    %87 = vector.broadcast %86 : vector<1x128xf32> to vector<16x128xf32>
    %88 = arith.addf %85, %87 : vector<16x128xf32>
    %cst_51 = arith.constant 0.000000e+00 : f32
    %89 = vector.broadcast %cst_51 : f32 to vector<16x128xf32>
    %90 = arith.cmpf ogt, %88, %89 : vector<16x128xf32>
    %cst_52 = arith.constant 0.000000e+00 : f32
    %91 = vector.broadcast %cst_52 : f32 to vector<16x128xf32>
    %92 = arith.minimumf %88, %91 : vector<16x128xf32>
    %93 = math.exp %92 : vector<16x128xf32>
    %cst_53 = arith.constant 1.000000e+00 : f32
    %94 = vector.broadcast %cst_53 : f32 to vector<16x128xf32>
    %95 = arith.subf %93, %94 : vector<16x128xf32>
    %96 = arith.select %90, %88, %95 : vector<16x128xi1>, vector<16x128xf32>
    %97 = arith.truncf %96 : vector<16x128xf32> to vector<16x128xbf16>
    %c7 = arith.constant 7 : index
    %c0_54 = arith.constant 0 : index
    %c0_55 = arith.constant 0 : index
    %98 = vector.load %arg2[%c7, %c0_54, %c0_55] : memref<8x128x128xbf16, #tpu.memory_space<vmem>>, vector<1x128x128xbf16>
    %99 = vector.shape_cast %98 : vector<1x128x128xbf16> to vector<128x128xbf16>
    %cst_56 = arith.constant dense<0.000000e+00> : vector<16x128xf32>
    %100 = tpu.matmul %97, %99, %cst_56 {dimension_numbers = #tpu.dot_dimension_numbers<[1], [0], [0], [1], [0, 0, 1, 1], [], []>} : vector<16x128xbf16>, vector<128x128xbf16>, vector<16x128xf32> -> vector<16x128xf32>
    %c7_57 = arith.constant 7 : index
    %c0_58 = arith.constant 0 : index
    %101 = vector.load %arg3[%c7_57, %c0_58] : memref<8x128xf32, #tpu.memory_space<vmem>>, vector<1x128xf32>
    %102 = vector.broadcast %101 : vector<1x128xf32> to vector<16x128xf32>
    %103 = arith.addf %100, %102 : vector<16x128xf32>
    %c0_59 = arith.constant 0 : index
    %c0_60 = arith.constant 0 : index
    %104 = vector.load %arg4[%c0_59, %c0_60] : memref<16x128xf32, #tpu.memory_space<vmem>>, vector<16x128xf32>
    tpu.vector_store %arg4[%c0_59, %c0_60], %103 {strides = array<i32>} : memref<16x128xf32, #tpu.memory_space<vmem>>, vector<16x128xf32>,
    return
  }
  func.func @transform_0(%arg0: i32) -> (i32, i32) {
    %c0_i32 = arith.constant 0 : i32
    %c0_i32_0 = arith.constant 0 : i32
    return %arg0, %c0_i32 : i32, i32
  }
  func.func @transform_1(%arg0: i32) -> (i32, i32, i32) {
    %c0_i32 = arith.constant 0 : i32
    %c0_i32_0 = arith.constant 0 : i32
    %c0_i32_1 = arith.constant 0 : i32
    %c0_i32_2 = arith.constant 0 : i32
    return %c0_i32, %c0_i32_0, %c0_i32_1 : i32, i32, i32
  }
  func.func @transform_2(%arg0: i32) -> (i32, i32) {
    %c0_i32 = arith.constant 0 : i32
    %c0_i32_0 = arith.constant 0 : i32
    %c0_i32_1 = arith.constant 0 : i32
    return %c0_i32, %c0_i32_0 : i32, i32
  }
  func.func @transform_3(%arg0: i32) -> (i32, i32) {
    %c0_i32 = arith.constant 0 : i32
    %c0_i32_0 = arith.constant 0 : i32
    return %arg0, %c0_i32 : i32, i32
  }
}

</mosaic_0001>

<llo_original>
// kernel: tpu_custom_call.1
$region0: #{tpu_custom_call.1}
  #allocation0 [shape = 'u32[]', space=smem, size = 0x4, offset = 0x4, fixed_abs, tag = 'smem constant byte address 0x4 - core index']
  #allocation1 [shape = 'u32[144,128]{1,0:T(1,128)}', space=vmem, size = 0x12000, scoped, tag = 'internal scratch']
  %s0 = inlined_call_operand.hbm [shape: bf16[16,128], index: 0, kind: input, shape index: {}]
  %s1 = inlined_call_operand.hbm [shape: bf16[8,128,128], index: 1, kind: input, shape index: {}]
  %s2 = inlined_call_operand.hbm [shape: f32[8,128], index: 2, kind: input, shape index: {}]
  %s3 = inlined_call_operand.hbm [shape: f32[16,128], index: 3, kind: output, shape index: {}]
  %s4 = sld [smem:[#allocation0]]
  $region34: #{tpu_custom_call.1} parent=0
    _
  %s6 = ssub.s32 1, %s4
  %s7 = scalar_select 0, %s6, %s4
  $region1: #{tpu_custom_call.1} parent=0
    #allocation2 [shape = 'u8[4096]{0}', space=vmem, size = 0x1000, scoped, tag = 'input window, operand 0, single buffered']
    #allocation3 [shape = 's32[1]{0}', space=sflag, size = 0x4, scoped, tag = 'scoped memory for tpu_custom_call.1']
    #allocation4 [shape = 's32[1]{0}', space=sflag, size = 0x4, scoped, tag = 'scoped memory for tpu_custom_call.1']
    #allocation5 [shape = 'u8[262144]{0}', space=vmem, size = 0x40000, scoped, tag = 'input window, operand 1, single buffered']
    #allocation6 [shape = 's32[1]{0}', space=sflag, size = 0x4, scoped, tag = 'scoped memory for tpu_custom_call.1']
    #allocation7 [shape = 'u8[4096]{0}', space=vmem, size = 0x1000, scoped, tag = 'input window, operand 2, single buffered']
    #allocation8 [shape = 'u8[8192]{0}', space=vmem, size = 0x2000, scoped, tag = 'output window, operand 0, single buffered']
    %8 = vsyncpa [#allocation3], 0
    %9 = vsyncpa [#allocation6], 0
    %10 = vsyncpa [#allocation4], 0
    // Predicated region
    $region2: #{tpu_custom_call.1} parent=1 // pred_check
      _
    $region3: #{tpu_custom_call.1} parent=1 // pred_check_branch
      %12 = sbr.rel (0) target = $region5
    $region4: #{tpu_custom_call.1} parent=1 // pred_region
      %s14 = ssub.s32 128, 128
      %15 = vsyncadd [#allocation3], %s14
      %s16 = sshll.u32 [#allocation2], 4
      %s17 = int_to_ptr.vmem [resolvable:$true] %s16
      %22 = dma.hbm_to_vmem [thread:$0]  %s0, 128, %s17, [#allocation3], 64, 64, 4
    $region5: #{tpu_custom_call.1} parent=1 // pred_fallthru
      _
    // Predicated region
    $region6: #{tpu_custom_call.1} parent=1 // pred_check
      _
    $region7: #{tpu_custom_call.1} parent=1 // pred_check_branch
      %24 = sbr.rel (0) target = $region9
    $region8: #{tpu_custom_call.1} parent=1 // pred_region
      %s26 = ssub.s32 8192, 8192
      %27 = vsyncadd [#allocation6], %s26
      %s28 = sshll.u32 [#allocation5], 4
      %s29 = int_to_ptr.vmem [resolvable:$true] %s28
      %34 = dma.hbm_to_vmem [thread:$0]  %s1, 8192, %s29, [#allocation6], 64, 64, 4
    $region9: #{tpu_custom_call.1} parent=1 // pred_fallthru
      _
    // Predicated region
    $region10: #{tpu_custom_call.1} parent=1 // pred_check
      _
    $region11: #{tpu_custom_call.1} parent=1 // pred_check_branch
      %36 = sbr.rel (0) target = $region13
    $region12: #{tpu_custom_call.1} parent=1 // pred_region
      %s38 = ssub.s32 128, 128
      %39 = vsyncadd [#allocation6], %s38
      %s41 = sshll.u32 [#allocation7], 4
      %s42 = int_to_ptr.vmem [resolvable:$true] %s41
      %44 = dma.hbm_to_vmem [thread:$0]  %s2, 128, %s42, [#allocation6]
    $region13: #{tpu_custom_call.1} parent=1 // pred_fallthru
      _
    // Predicated region
    $region14: #{tpu_custom_call.1} parent=1 // pred_check
      _
    $region15: #{tpu_custom_call.1} parent=1 // pred_check_branch
      %46 = sbr.rel (0) target = $region17
    $region16: #{tpu_custom_call.1} parent=1 // pred_region
      %47 = dma.done [#allocation3], 128
    $region17: #{tpu_custom_call.1} parent=1 // pred_fallthru
      _
    // Predicated region
    $region18: #{tpu_custom_call.1} parent=1 // pred_check
      _
    $region19: #{tpu_custom_call.1} parent=1 // pred_check_branch
      %49 = sbr.rel (0) target = $region21
    $region20: #{tpu_custom_call.1} parent=1 // pred_region
      %50 = dma.done [#allocation6], 8192
    $region21: #{tpu_custom_call.1} parent=1 // pred_fallthru
      _
    // Predicated region
    $region22: #{tpu_custom_call.1} parent=1 // pred_check
      _
    $region23: #{tpu_custom_call.1} parent=1 // pred_check_branch
      %52 = sbr.rel (0) target = $region25
    $region24: #{tpu_custom_call.1} parent=1 // pred_region
      %53 = dma.done [#allocation6], 128
    $region25: #{tpu_custom_call.1} parent=1 // pred_fallthru
      _
    %v55 = vld [vmem:[#allocation2] sm:$0xf]
    %v56 = vld [vmem:[#allocation2 + $0x4] sm:$0xf]
    %v57 = vld [vmem:[#allocation5] sm:$0xf]
    %v58 = vld [vmem:[#allocation5 + $0x4] sm:$0xf]
    %v59 = vld [vmem:[#allocation5 + $0x8] sm:$0xf]
    %v60 = vld [vmem:[#allocation5 + $0xc] sm:$0xf]
    %v61 = vld [vmem:[#allocation5 + $0x10] sm:$0xf]
    %v62 = vld [vmem:[#allocation5 + $0x14] sm:$0xf]
    %v63 = vld [vmem:[#allocation5 + $0x18] sm:$0xf]
    %v64 = vld [vmem:[#allocation5 + $0x1c] sm:$0xf]
    %v65 = vld [vmem:[#allocation5 + $0x20] sm:$0xf]
    %v66 = vld [vmem:[#allocation5 + $0x24] sm:$0xf]
    %v67 = vld [vmem:[#allocation5 + $0x28] sm:$0xf]
    %v68 = vld [vmem:[#allocation5 + $0x2c] sm:$0xf]
    %v69 = vld [vmem:[#allocation5 + $0x30] sm:$0xf]
    %v70 = vld [vmem:[#allocation5 + $0x34] sm:$0xf]
    %v71 = vld [vmem:[#allocation5 + $0x38] sm:$0xf]
    %v72 = vld [vmem:[#allocation5 + $0x3c] sm:$0xf]
    %v73 = vld [vmem:[#allocation7] sm:$0x1]
    %v74 = vlaneseq
    %v75 = vshrl.u32 %v74, 7
    %v76 = vsub.s32 0, %v75
    %v77 = vrot.slane %v73, %v76
    %v80 = vunpack.c.l.b16 %v55
    %v81 = vunpack.c.l.b16 %v56
    %v82 = vpack.c.b16 %v81, %v80
    %v100 = vunpack.c.l.b16 %v57
    %v101 = vunpack.c.l.b16 %v58
    %v102 = vunpack.c.l.b16 %v59
    %v103 = vunpack.c.l.b16 %v60
    %v104 = vunpack.c.l.b16 %v61
    %v105 = vunpack.c.l.b16 %v62
    %v106 = vunpack.c.l.b16 %v63
    %v107 = vunpack.c.l.b16 %v64
    %v108 = vunpack.c.l.b16 %v65
    %v109 = vunpack.c.l.b16 %v66
    %v110 = vunpack.c.l.b16 %v67
    %v111 = vunpack.c.l.b16 %v68
    %v112 = vunpack.c.l.b16 %v69
    %v113 = vunpack.c.l.b16 %v70
    %v114 = vunpack.c.l.b16 %v71
    %v115 = vunpack.c.l.b16 %v72
    %v116 = vpack.c.b16 %v101, %v100
    %v117 = vpack.c.b16 %v103, %v102
    %v118 = vpack.c.b16 %v105, %v104
    %v119 = vpack.c.b16 %v107, %v106
    %v120 = vpack.c.b16 %v109, %v108
    %v121 = vpack.c.b16 %v111, %v110
    %v122 = vpack.c.b16 %v113, %v112
    %v123 = vpack.c.b16 %v115, %v114
    %132 = vmatprep.subr.bf16.mxu0 0
    %133 = vmatpush1.bf16.msra.mxu0 %v116
    %134 = vmatprep.subr.bf16.mxu0 0
    %135 = vmatpush1.bf16.msra.mxu0 %v117
    %136 = vmatprep.subr.bf16.mxu0 0
    %137 = vmatpush1.bf16.msra.mxu0 %v118
    %138 = vmatprep.subr.bf16.mxu0 0
    %139 = vmatpush1.bf16.msra.mxu0 %v119
    %140 = vmatprep.subr.bf16.mxu0 0
    %141 = vmatpush1.bf16.msra.mxu0 %v120
    %142 = vmatprep.subr.bf16.mxu0 0
    %143 = vmatpush1.bf16.msra.mxu0 %v121
    %144 = vmatprep.subr.bf16.mxu0 0
    %145 = vmatpush1.bf16.msra.mxu0 %v122
    %146 = vmatprep.subr.bf16.mxu0 0
    %147 = vmatpush1.bf16.msra.mxu0 %v123
    %148 = vmatprep.subr.bf16.mxu0 0
    %149 = vmatpush1.bf16.msra.mxu0 0
    %150 = vmatprep.subr.bf16.mxu0 0
    %151 = vmatpush1.bf16.msra.mxu0 0
    %152 = vmatprep.subr.bf16.mxu0 0
    %153 = vmatpush1.bf16.msra.mxu0 0
    %154 = vmatprep.subr.bf16.mxu0 0
    %155 = vmatpush1.bf16.msra.mxu0 0
    %156 = vmatprep.subr.bf16.mxu0 0
    %157 = vmatpush1.bf16.msra.mxu0 0
    %158 = vmatprep.subr.bf16.mxu0 0
    %159 = vmatpush1.bf16.msra.mxu0 0
    %160 = vmatprep.subr.bf16.mxu0 0
    %161 = vmatpush1.bf16.msra.mxu0 0
    %162 = vmatprep.subr.bf16.mxu0 0
    %163 = vmatpush1.bf16.msra.mxu0 0
    %164 = vmatprep.mubr.bf16.mxu0 0
    %165 = vmatmul.mubr.bf16.gmra.mrb[0].mxu0 %v82
    %v166 = vpop.f32.mrb[0].mxu0
    %v167 = vadd.f32 %v77, %v166
    %v168 = vpop.f32.mrb[0].mxu0
    %v169 = vpop.f32.mrb[0].mxu0
    %v170 = vadd.f32 %v77, %v169
    %v171 = vpop.f32.mrb[0].mxu0
    %172 = vdwg.mxu0
    %vm173 = vcmp.gt.f32.partialorder %v167, 0.0
    %vm174 = vcmp.gt.f32.partialorder %v170, 0.0
    %v175 = vmin.f32 %v167, 0.0
    %v176 = vmin.f32 %v170, 0.0
    %v177 = vmul.f32 %v175, 1.442695
    %v178 = vpow.pop %v177
    %v179 = vmul.f32 %v176, 1.442695
    %v180 = vpow.pop %v179
    %v181 = vsub.f32 %v178, 1.0
    %v182 = vsub.f32 %v180, 1.0
    %v183 = vsel %vm173, %v167, %v181
    %v184 = vsel %vm174, %v170, %v182
    %v185 = vpack.c.bf16 %v184, %v183
    %s186 = scalar_lea.vmem [#allocation5], 64
    %v187 = vld [vmem:[%s186] sm:$0xf]
    %v188 = vld [vmem:[%s186 + $0x4] sm:$0xf]
    %v189 = vld [vmem:[%s186 + $0x8] sm:$0xf]
    %v190 = vld [vmem:[%s186 + $0xc] sm:$0xf]
    %v191 = vld [vmem:[%s186 + $0x10] sm:$0xf]
    %v192 = vld [vmem:[%s186 + $0x14] sm:$0xf]
    %v193 = vld [vmem:[%s186 + $0x18] sm:$0xf]
    %v194 = vld [vmem:[%s186 + $0x1c] sm:$0xf]
    %v195 = vld [vmem:[%s186 + $0x20] sm:$0xf]
    %v196 = vld [vmem:[%s186 + $0x24] sm:$0xf]
    %v197 = vld [vmem:[%s186 + $0x28] sm:$0xf]
    %v198 = vld [vmem:[%s186 + $0x2c] sm:$0xf]
    %v199 = vld [vmem:[%s186 + $0x30] sm:$0xf]
    %v200 = vld [vmem:[%s186 + $0x34] sm:$0xf]
    %v201 = vld [vmem:[%s186 + $0x38] sm:$0xf]
    %v202 = vld [vmem:[%s186 + $0x3c] sm:$0xf]
    %v203 = vld [vmem:[#allocation7 + $0x1] sm:$0x1]
    %v204 = vlaneseq
    %v205 = vshrl.u32 %v204, 7
    %v206 = vsub.s32 0, %v205
    %v207 = vrot.slane %v203, %v206
    %v224 = vunpack.c.l.b16 %v187
    %v225 = vunpack.c.l.b16 %v188
    %v226 = vunpack.c.l.b16 %v189
    %v227 = vunpack.c.l.b16 %v190
    %v228 = vunpack.c.l.b16 %v191
    %v229 = vunpack.c.l.b16 %v192
    %v230 = vunpack.c.l.b16 %v193
    %v231 = vunpack.c.l.b16 %v194
    %v232 = vunpack.c.l.b16 %v195
    %v233 = vunpack.c.l.b16 %v196
    %v234 = vunpack.c.l.b16 %v197
    %v235 = vunpack.c.l.b16 %v198
    %v236 = vunpack.c.l.b16 %v199
    %v237 = vunpack.c.l.b16 %v200
    %v238 = vunpack.c.l.b16 %v201
    %v239 = vunpack.c.l.b16 %v202
    %v240 = vpack.c.b16 %v225, %v224
    %v241 = vpack.c.b16 %v227, %v226
    %v242 = vpack.c.b16 %v229, %v228
    %v243 = vpack.c.b16 %v231, %v230
    %v244 = vpack.c.b16 %v233, %v232
    %v245 = vpack.c.b16 %v235, %v234
    %v246 = vpack.c.b16 %v237, %v236
    %v247 = vpack.c.b16 %v239, %v238
    %256 = vmatprep.subr.bf16.mxu0 0
    %257 = vmatpush1.bf16.msra.mxu0 %v240
    %258 = vmatprep.subr.bf16.mxu0 0
    %259 = vmatpush1.bf16.msra.mxu0 %v241
    %260 = vmatprep.subr.bf16.mxu0 0
    %261 = vmatpush1.bf16.msra.mxu0 %v242
    %262 = vmatprep.subr.bf16.mxu0 0
    %263 = vmatpush1.bf16.msra.mxu0 %v243
    %264 = vmatprep.subr.bf16.mxu0 0
    %265 = vmatpush1.bf16.msra.mxu0 %v244
    %266 = vmatprep.subr.bf16.mxu0 0
    %267 = vmatpush1.bf16.msra.mxu0 %v245
    %268 = vmatprep.subr.bf16.mxu0 0
    %269 = vmatpush1.bf16.msra.mxu0 %v246
    %270 = vmatprep.subr.bf16.mxu0 0
    %271 = vmatpush1.bf16.msra.mxu0 %v247
    %272 = vmatprep.subr.bf16.mxu0 0
    %273 = vmatpush1.bf16.msra.mxu0 0
    %274 = vmatprep.subr.bf16.mxu0 0
    %275 = vmatpush1.bf16.msra.mxu0 0
    %276 = vmatprep.subr.bf16.mxu0 0
    %277 = vmatpush1.bf16.msra.mxu0 0
    %278 = vmatprep.subr.bf16.mxu0 0
    %279 = vmatpush1.bf16.msra.mxu0 0
    %280 = vmatprep.subr.bf16.mxu0 0
    %281 = vmatpush1.bf16.msra.mxu0 0
    %282 = vmatprep.subr.bf16.mxu0 0
    %283 = vmatpush1.bf16.msra.mxu0 0
    %284 = vmatprep.subr.bf16.mxu0 0
    %285 = vmatpush1.bf16.msra.mxu0 0
    %286 = vmatprep.subr.bf16.mxu0 0
    %287 = vmatpush1.bf16.msra.mxu0 0
    %288 = vmatprep.mubr.bf16.mxu0 0
    %289 = vmatmul.mubr.bf16.gmra.mrb[0].mxu0 %v185
    %v290 = vpop.f32.mrb[0].mxu0
    %v291 = vadd.f32 %v207, %v290
    %v292 = vpop.f32.mrb[0].mxu0
    %v293 = vpop.f32.mrb[0].mxu0
    %v294 = vadd.f32 %v207, %v293
    %v295 = vpop.f32.mrb[0].mxu0
    %296 = vdwg.mxu0
    %vm297 = vcmp.gt.f32.partialorder %v291, 0.0
    %vm298 = vcmp.gt.f32.partialorder %v294, 0.0
    %v299 = vmin.f32 %v291, 0.0
    %v300 = vmin.f32 %v294, 0.0
    %v301 = vmul.f32 %v299, 1.442695
    %v302 = vpow.pop %v301
    %v303 = vmul.f32 %v300, 1.442695
    %v304 = vpow.pop %v303
    %v305 = vsub.f32 %v302, 1.0
    %v306 = vsub.f32 %v304, 1.0
    %v307 = vsel %vm297, %v291, %v305
    %v308 = vsel %vm298, %v294, %v306
    %v309 = vpack.c.bf16 %v308, %v307
    %s310 = scalar_lea.vmem [#allocation5], 128
    %v311 = vld [vmem:[%s310] sm:$0xf]
    %v312 = vld [vmem:[%s310 + $0x4] sm:$0xf]
    %v313 = vld [vmem:[%s310 + $0x8] sm:$0xf]
    %v314 = vld [vmem:[%s310 + $0xc] sm:$0xf]
    %v315 = vld [vmem:[%s310 + $0x10] sm:$0xf]
    %v316 = vld [vmem:[%s310 + $0x14] sm:$0xf]
    %v317 = vld [vmem:[%s310 + $0x18] sm:$0xf]
    %v318 = vld [vmem:[%s310 + $0x1c] sm:$0xf]
    %v319 = vld [vmem:[%s310 + $0x20] sm:$0xf]
    %v320 = vld [vmem:[%s310 + $0x24] sm:$0xf]
    %v321 = vld [vmem:[%s310 + $0x28] sm:$0xf]
    %v322 = vld [vmem:[%s310 + $0x2c] sm:$0xf]
    %v323 = vld [vmem:[%s310 + $0x30] sm:$0xf]
    %v324 = vld [vmem:[%s310 + $0x34] sm:$0xf]
    %v325 = vld [vmem:[%s310 + $0x38] sm:$0xf]
    %v326 = vld [vmem:[%s310 + $0x3c] sm:$0xf]
    %v327 = vld [vmem:[#allocation7 + $0x2] sm:$0x1]
    %v328 = vlaneseq
    %v329 = vshrl.u32 %v328, 7
    %v330 = vsub.s32 0, %v329
    %v331 = vrot.slane %v327, %v330
    %v348 = vunpack.c.l.b16 %v311
    %v349 = vunpack.c.l.b16 %v312
    %v350 = vunpack.c.l.b16 %v313
    %v351 = vunpack.c.l.b16 %v314
    %v352 = vunpack.c.l.b16 %v315
    %v353 = vunpack.c.l.b16 %v316
    %v354 = vunpack.c.l.b16 %v317
    %v355 = vunpack.c.l.b16 %v318
    %v356 = vunpack.c.l.b16 %v319
    %v357 = vunpack.c.l.b16 %v320
    %v358 = vunpack.c.l.b16 %v321
    %v359 = vunpack.c.l.b16 %v322
    %v360 = vunpack.c.l.b16 %v323
    %v361 = vunpack.c.l.b16 %v324
    %v362 = vunpack.c.l.b16 %v325
    %v363 = vunpack.c.l.b16 %v326
    %v364 = vpack.c.b16 %v349, %v348
    %v365 = vpack.c.b16 %v351, %v350
    %v366 = vpack.c.b16 %v353, %v352
    %v367 = vpack.c.b16 %v355, %v354
    %v368 = vpack.c.b16 %v357, %v356
    %v369 = vpack.c.b16 %v359, %v358
    %v370 = vpack.c.b16 %v361, %v360
    %v371 = vpack.c.b16 %v363, %v362
    %380 = vmatprep.subr.bf16.mxu0 0
    %381 = vmatpush1.bf16.msra.mxu0 %v364
    %382 = vmatprep.subr.bf16.mxu0 0
    %383 = vmatpush1.bf16.msra.mxu0 %v365
    %384 = vmatprep.subr.bf16.mxu0 0
    %385 = vmatpush1.bf16.msra.mxu0 %v366
    %386 = vmatprep.subr.bf16.mxu0 0
    %387 = vmatpush1.bf16.msra.mxu0 %v367
    %388 = vmatprep.subr.bf16.mxu0 0
    %389 = vmatpush1.bf16.msra.mxu0 %v368
    %390 = vmatprep.subr.bf16.mxu0 0
    %391 = vmatpush1.bf16.msra.mxu0 %v369
    %392 = vmatprep.subr.bf16.mxu0 0
    %393 = vmatpush1.bf16.msra.mxu0 %v370
    %394 = vmatprep.subr.bf16.mxu0 0
    %395 = vmatpush1.bf16.msra.mxu0 %v371
    %396 = vmatprep.subr.bf16.mxu0 0
    %397 = vmatpush1.bf16.msra.mxu0 0
    %398 = vmatprep.subr.bf16.mxu0 0
    %399 = vmatpush1.bf16.msra.mxu0 0
    %400 = vmatprep.subr.bf16.mxu0 0
    %401 = vmatpush1.bf16.msra.mxu0 0
    %402 = vmatprep.subr.bf16.mxu0 0
    %403 = vmatpush1.bf16.msra.mxu0 0
    %404 = vmatprep.subr.bf16.mxu0 0
    %405 = vmatpush1.bf16.msra.mxu0 0
    %406 = vmatprep.subr.bf16.mxu0 0
    %407 = vmatpush1.bf16.msra.mxu0 0
    %408 = vmatprep.subr.bf16.mxu0 0
    %409 = vmatpush1.bf16.msra.mxu0 0
    %410 = vmatprep.subr.bf16.mxu0 0
    %411 = vmatpush1.bf16.msra.mxu0 0
    %412 = vmatprep.mubr.bf16.mxu0 0
    %413 = vmatmul.mubr.bf16.gmra.mrb[0].mxu0 %v309
    %v414 = vpop.f32.mrb[0].mxu0
    %v415 = vadd.f32 %v331, %v414
    %v416 = vpop.f32.mrb[0].mxu0
    %v417 = vpop.f32.mrb[0].mxu0
    %v418 = vadd.f32 %v331, %v417
    %v419 = vpop.f32.mrb[0].mxu0
    %420 = vdwg.mxu0
    %vm421 = vcmp.gt.f32.partialorder %v415, 0.0
    %vm422 = vcmp.gt.f32.partialorder %v418, 0.0
    %v423 = vmin.f32 %v415, 0.0
    %v424 = vmin.f32 %v418, 0.0
    %v425 = vmul.f32 %v423, 1.442695
    %v426 = vpow.pop %v425
    %v427 = vmul.f32 %v424, 1.442695
    %v428 = vpow.pop %v427
    %v429 = vsub.f32 %v426, 1.0
    %v430 = vsub.f32 %v428, 1.0
    %v431 = vsel %vm421, %v415, %v429
    %v432 = vsel %vm422, %v418, %v430
    %v433 = vpack.c.bf16 %v432, %v431
    %s434 = scalar_lea.vmem [#allocation5], 192
    %v435 = vld [vmem:[%s434] sm:$0xf]
    %v436 = vld [vmem:[%s434 + $0x4] sm:$0xf]
    %v437 = vld [vmem:[%s434 + $0x8] sm:$0xf]
    %v438 = vld [vmem:[%s434 + $0xc] sm:$0xf]
    %v439 = vld [vmem:[%s434 + $0x10] sm:$0xf]
    %v440 = vld [vmem:[%s434 + $0x14] sm:$0xf]
    %v441 = vld [vmem:[%s434 + $0x18] sm:$0xf]
    %v442 = vld [vmem:[%s434 + $0x1c] sm:$0xf]
    %v443 = vld [vmem:[%s434 + $0x20] sm:$0xf]
    %v444 = vld [vmem:[%s434 + $0x24] sm:$0xf]
    %v445 = vld [vmem:[%s434 + $0x28] sm:$0xf]
    %v446 = vld [vmem:[%s434 + $0x2c] sm:$0xf]
    %v447 = vld [vmem:[%s434 + $0x30] sm:$0xf]
    %v448 = vld [vmem:[%s434 + $0x34] sm:$0xf]
    %v449 = vld [vmem:[%s434 + $0x38] sm:$0xf]
    %v450 = vld [vmem:[%s434 + $0x3c] sm:$0xf]
    %v451 = vld [vmem:[#allocation7 + $0x3] sm:$0x1]
    %v452 = vlaneseq
    %v453 = vshrl.u32 %v452, 7
    %v454 = vsub.s32 0, %v453
    %v455 = vrot.slane %v451, %v454
    %v472 = vunpack.c.l.b16 %v435
    %v473 = vunpack.c.l.b16 %v436
    %v474 = vunpack.c.l.b16 %v437
    %v475 = vunpack.c.l.b16 %v438
    %v476 = vunpack.c.l.b16 %v439
    %v477 = vunpack.c.l.b16 %v440
    %v478 = vunpack.c.l.b16 %v441
    %v479 = vunpack.c.l.b16 %v442
    %v480 = vunpack.c.l.b16 %v443
    %v481 = vunpack.c.l.b16 %v444
    %v482 = vunpack.c.l.b16 %v445
    %v483 = vunpack.c.l.b16 %v446
    %v484 = vunpack.c.l.b16 %v447
    %v485 = vunpack.c.l.b16 %v448
    %v486 = vunpack.c.l.b16 %v449
    %v487 = vunpack.c.l.b16 %v450
    %v488 = vpack.c.b16 %v473, %v472
    %v489 = vpack.c.b16 %v475, %v474
    %v490 = vpack.c.b16 %v477, %v476
    %v491 = vpack.c.b16 %v479, %v478
    %v492 = vpack.c.b16 %v481, %v480
    %v493 = vpack.c.b16 %v483, %v482
    %v494 = vpack.c.b16 %v485, %v484
    %v495 = vpack.c.b16 %v487, %v486
    %504 = vmatprep.subr.bf16.mxu0 0
    %505 = vmatpush1.bf16.msra.mxu0 %v488
    %506 = vmatprep.subr.bf16.mxu0 0
    %507 = vmatpush1.bf16.msra.mxu0 %v489
    %508 = vmatprep.subr.bf16.mxu0 0
    %509 = vmatpush1.bf16.msra.mxu0 %v490
    %510 = vmatprep.subr.bf16.mxu0 0
    %511 = vmatpush1.bf16.msra.mxu0 %v491
    %512 = vmatprep.subr.bf16.mxu0 0
    %513 = vmatpush1.bf16.msra.mxu0 %v492
    %514 = vmatprep.subr.bf16.mxu0 0
    %515 = vmatpush1.bf16.msra.mxu0 %v493
    %516 = vmatprep.subr.bf16.mxu0 0
    %517 = vmatpush1.bf16.msra.mxu0 %v494
    %518 = vmatprep.subr.bf16.mxu0 0
    %519 = vmatpush1.bf16.msra.mxu0 %v495
    %520 = vmatprep.subr.bf16.mxu0 0
    %521 = vmatpush1.bf16.msra.mxu0 0
    %522 = vmatprep.subr.bf16.mxu0 0
    %523 = vmatpush1.bf16.msra.mxu0 0
    %524 = vmatprep.subr.bf16.mxu0 0
    %525 = vmatpush1.bf16.msra.mxu0 0
    %526 = vmatprep.subr.bf16.mxu0 0
    %527 = vmatpush1.bf16.msra.mxu0 0
    %528 = vmatprep.subr.bf16.mxu0 0
    %529 = vmatpush1.bf16.msra.mxu0 0
    %530 = vmatprep.subr.bf16.mxu0 0
    %531 = vmatpush1.bf16.msra.mxu0 0
    %532 = vmatprep.subr.bf16.mxu0 0
    %533 = vmatpush1.bf16.msra.mxu0 0
    %534 = vmatprep.subr.bf16.mxu0 0
    %535 = vmatpush1.bf16.msra.mxu0 0
    %536 = vmatprep.mubr.bf16.mxu0 0
    %537 = vmatmul.mubr.bf16.gmra.mrb[0].mxu0 %v433
    %v538 = vpop.f32.mrb[0].mxu0
    %v539 = vadd.f32 %v455, %v538
    %v540 = vpop.f32.mrb[0].mxu0
    %v541 = vpop.f32.mrb[0].mxu0
    %v542 = vadd.f32 %v455, %v541
    %v543 = vpop.f32.mrb[0].mxu0
    %544 = vdwg.mxu0
    %v545 = vpack.c.bf16 %v542, %v539
    %s546 = scalar_lea.vmem [#allocation5], 256
    %v547 = vld [vmem:[%s546] sm:$0xf]
    %v548 = vld [vmem:[%s546 + $0x4] sm:$0xf]
    %v549 = vld [vmem:[%s546 + $0x8] sm:$0xf]
    %v550 = vld [vmem:[%s546 + $0xc] sm:$0xf]
    %v551 = vld [vmem:[%s546 + $0x10] sm:$0xf]
    %v552 = vld [vmem:[%s546 + $0x14] sm:$0xf]
    %v553 = vld [vmem:[%s546 + $0x18] sm:$0xf]
    %v554 = vld [vmem:[%s546 + $0x1c] sm:$0xf]
    %v555 = vld [vmem:[%s546 + $0x20] sm:$0xf]
    %v556 = vld [vmem:[%s546 + $0x24] sm:$0xf]
    %v557 = vld [vmem:[%s546 + $0x28] sm:$0xf]
    %v558 = vld [vmem:[%s546 + $0x2c] sm:$0xf]
    %v559 = vld [vmem:[%s546 + $0x30] sm:$0xf]
    %v560 = vld [vmem:[%s546 + $0x34] sm:$0xf]
    %v561 = vld [vmem:[%s546 + $0x38] sm:$0xf]
    %v562 = vld [vmem:[%s546 + $0x3c] sm:$0xf]
    %v563 = vld [vmem:[#allocation7 + $0x4] sm:$0x1]
    %v564 = vlaneseq
    %v565 = vshrl.u32 %v564, 7
    %v566 = vsub.s32 0, %v565
    %v567 = vrot.slane %v563, %v566
    %v584 = vunpack.c.l.b16 %v547
    %v585 = vunpack.c.l.b16 %v548
    %v586 = vunpack.c.l.b16 %v549
    %v587 = vunpack.c.l.b16 %v550
    %v588 = vunpack.c.l.b16 %v551
    %v589 = vunpack.c.l.b16 %v552
    %v590 = vunpack.c.l.b16 %v553
    %v591 = vunpack.c.l.b16 %v554
    %v592 = vunpack.c.l.b16 %v555
    %v593 = vunpack.c.l.b16 %v556
    %v594 = vunpack.c.l.b16 %v557
    %v595 = vunpack.c.l.b16 %v558
    %v596 = vunpack.c.l.b16 %v559
    %v597 = vunpack.c.l.b16 %v560
    %v598 = vunpack.c.l.b16 %v561
    %v599 = vunpack.c.l.b16 %v562
    %v600 = vpack.c.b16 %v585, %v584
    %v601 = vpack.c.b16 %v587, %v586
    %v602 = vpack.c.b16 %v589, %v588
    %v603 = vpack.c.b16 %v591, %v590
    %v604 = vpack.c.b16 %v593, %v592
    %v605 = vpack.c.b16 %v595, %v594
    %v606 = vpack.c.b16 %v597, %v596
    %v607 = vpack.c.b16 %v599, %v598
    %616 = vmatprep.subr.bf16.mxu0 0
    %617 = vmatpush1.bf16.msra.mxu0 %v600
    %618 = vmatprep.subr.bf16.mxu0 0
    %619 = vmatpush1.bf16.msra.mxu0 %v601
    %620 = vmatprep.subr.bf16.mxu0 0
    %621 = vmatpush1.bf16.msra.mxu0 %v602
    %622 = vmatprep.subr.bf16.mxu0 0
    %623 = vmatpush1.bf16.msra.mxu0 %v603
    %624 = vmatprep.subr.bf16.mxu0 0
    %625 = vmatpush1.bf16.msra.mxu0 %v604
    %626 = vmatprep.subr.bf16.mxu0 0
    %627 = vmatpush1.bf16.msra.mxu0 %v605
    %628 = vmatprep.subr.bf16.mxu0 0
    %629 = vmatpush1.bf16.msra.mxu0 %v606
    %630 = vmatprep.subr.bf16.mxu0 0
    %631 = vmatpush1.bf16.msra.mxu0 %v607
    %632 = vmatprep.subr.bf16.mxu0 0
    %633 = vmatpush1.bf16.msra.mxu0 0
    %634 = vmatprep.subr.bf16.mxu0 0
    %635 = vmatpush1.bf16.msra.mxu0 0
    %636 = vmatprep.subr.bf16.mxu0 0
    %637 = vmatpush1.bf16.msra.mxu0 0
    %638 = vmatprep.subr.bf16.mxu0 0
    %639 = vmatpush1.bf16.msra.mxu0 0
    %640 = vmatprep.subr.bf16.mxu0 0
    %641 = vmatpush1.bf16.msra.mxu0 0
    %642 = vmatprep.subr.bf16.mxu0 0
    %643 = vmatpush1.bf16.msra.mxu0 0
    %644 = vmatprep.subr.bf16.mxu0 0
    %645 = vmatpush1.bf16.msra.mxu0 0
    %646 = vmatprep.subr.bf16.mxu0 0
    %647 = vmatpush1.bf16.msra.mxu0 0
    %648 = vmatprep.mubr.bf16.mxu0 0
    %649 = vmatmul.mubr.bf16.gmra.mrb[0].mxu0 %v545
    %v650 = vpop.f32.mrb[0].mxu0
    %v651 = vadd.f32 %v567, %v650
    %v652 = vpop.f32.mrb[0].mxu0
    %v653 = vpop.f32.mrb[0].mxu0
    %v654 = vadd.f32 %v567, %v653
    %v655 = vpop.f32.mrb[0].mxu0
    %656 = vdwg.mxu0
    %vm657 = vcmp.gt.f32.partialorder %v651, 0.0
    %vm658 = vcmp.gt.f32.partialorder %v654, 0.0
    %v659 = vmin.f32 %v651, 0.0
    %v660 = vmin.f32 %v654, 0.0
    %v661 = vmul.f32 %v659, 1.442695
    %v662 = vpow.pop %v661
    %v663 = vmul.f32 %v660, 1.442695
    %v664 = vpow.pop %v663
    %v665 = vsub.f32 %v662, 1.0
    %v666 = vsub.f32 %v664, 1.0
    %v667 = vsel %vm657, %v651, %v665
    %v668 = vsel %vm658, %v654, %v666
    %v669 = vpack.c.bf16 %v668, %v667
    %s670 = scalar_lea.vmem [#allocation5], 320
    %v671 = vld [vmem:[%s670] sm:$0xf]
    %v672 = vld [vmem:[%s670 + $0x4] sm:$0xf]
    %v673 = vld [vmem:[%s670 + $0x8] sm:$0xf]
    %v674 = vld [vmem:[%s670 + $0xc] sm:$0xf]
    %v675 = vld [vmem:[%s670 + $0x10] sm:$0xf]
    %v676 = vld [vmem:[%s670 + $0x14] sm:$0xf]
    %v677 = vld [vmem:[%s670 + $0x18] sm:$0xf]
    %v678 = vld [vmem:[%s670 + $0x1c] sm:$0xf]
    %v679 = vld [vmem:[%s670 + $0x20] sm:$0xf]
    %v680 = vld [vmem:[%s670 + $0x24] sm:$0xf]
    %v681 = vld [vmem:[%s670 + $0x28] sm:$0xf]
    %v682 = vld [vmem:[%s670 + $0x2c] sm:$0xf]
    %v683 = vld [vmem:[%s670 + $0x30] sm:$0xf]
    %v684 = vld [vmem:[%s670 + $0x34] sm:$0xf]
    %v685 = vld [vmem:[%s670 + $0x38] sm:$0xf]
    %v686 = vld [vmem:[%s670 + $0x3c] sm:$0xf]
    %v687 = vld [vmem:[#allocation7 + $0x5] sm:$0x1]
    %v688 = vlaneseq
    %v689 = vshrl.u32 %v688, 7
    %v690 = vsub.s32 0, %v689
    %v691 = vrot.slane %v687, %v690
    %v708 = vunpack.c.l.b16 %v671
    %v709 = vunpack.c.l.b16 %v672
    %v710 = vunpack.c.l.b16 %v673
    %v711 = vunpack.c.l.b16 %v674
    %v712 = vunpack.c.l.b16 %v675
    %v713 = vunpack.c.l.b16 %v676
    %v714 = vunpack.c.l.b16 %v677
    %v715 = vunpack.c.l.b16 %v678
    %v716 = vunpack.c.l.b16 %v679
    %v717 = vunpack.c.l.b16 %v680
    %v718 = vunpack.c.l.b16 %v681
    %v719 = vunpack.c.l.b16 %v682
    %v720 = vunpack.c.l.b16 %v683
    %v721 = vunpack.c.l.b16 %v684
    %v722 = vunpack.c.l.b16 %v685
    %v723 = vunpack.c.l.b16 %v686
    %v724 = vpack.c.b16 %v709, %v708
    %v725 = vpack.c.b16 %v711, %v710
    %v726 = vpack.c.b16 %v713, %v712
    %v727 = vpack.c.b16 %v715, %v714
    %v728 = vpack.c.b16 %v717, %v716
    %v729 = vpack.c.b16 %v719, %v718
    %v730 = vpack.c.b16 %v721, %v720
    %v731 = vpack.c.b16 %v723, %v722
    %740 = vmatprep.subr.bf16.mxu0 0
    %741 = vmatpush1.bf16.msra.mxu0 %v724
    %742 = vmatprep.subr.bf16.mxu0 0
    %743 = vmatpush1.bf16.msra.mxu0 %v725
    %744 = vmatprep.subr.bf16.mxu0 0
    %745 = vmatpush1.bf16.msra.mxu0 %v726
    %746 = vmatprep.subr.bf16.mxu0 0
    %747 = vmatpush1.bf16.msra.mxu0 %v727
    %748 = vmatprep.subr.bf16.mxu0 0
    %749 = vmatpush1.bf16.msra.mxu0 %v728
    %750 = vmatprep.subr.bf16.mxu0 0
    %751 = vmatpush1.bf16.msra.mxu0 %v729
    %752 = vmatprep.subr.bf16.mxu0 0
    %753 = vmatpush1.bf16.msra.mxu0 %v730
    %754 = vmatprep.subr.bf16.mxu0 0
    %755 = vmatpush1.bf16.msra.mxu0 %v731
    %756 = vmatprep.subr.bf16.mxu0 0
    %757 = vmatpush1.bf16.msra.mxu0 0
    %758 = vmatprep.subr.bf16.mxu0 0
    %759 = vmatpush1.bf16.msra.mxu0 0
    %760 = vmatprep.subr.bf16.mxu0 0
    %761 = vmatpush1.bf16.msra.mxu0 0
    %762 = vmatprep.subr.bf16.mxu0 0
    %763 = vmatpush1.bf16.msra.mxu0 0
    %764 = vmatprep.subr.bf16.mxu0 0
    %765 = vmatpush1.bf16.msra.mxu0 0
    %766 = vmatprep.subr.bf16.mxu0 0
    %767 = vmatpush1.bf16.msra.mxu0 0
    %768 = vmatprep.subr.bf16.mxu0 0
    %769 = vmatpush1.bf16.msra.mxu0 0
    %770 = vmatprep.subr.bf16.mxu0 0
    %771 = vmatpush1.bf16.msra.mxu0 0
    %772 = vmatprep.mubr.bf16.mxu0 0
    %773 = vmatmul.mubr.bf16.gmra.mrb[0].mxu0 %v669
    %v774 = vpop.f32.mrb[0].mxu0
    %v775 = vadd.f32 %v691, %v774
    %v776 = vpop.f32.mrb[0].mxu0
    %v777 = vpop.f32.mrb[0].mxu0
    %v778 = vadd.f32 %v691, %v777
    %v779 = vpop.f32.mrb[0].mxu0
    %780 = vdwg.mxu0
    %vm781 = vcmp.gt.f32.partialorder %v775, 0.0
    %vm782 = vcmp.gt.f32.partialorder %v778, 0.0
    %v783 = vmin.f32 %v775, 0.0
    %v784 = vmin.f32 %v778, 0.0
    %v785 = vmul.f32 %v783, 1.442695
    %v786 = vpow.pop %v785
    %v787 = vmul.f32 %v784, 1.442695
    %v788 = vpow.pop %v787
    %v789 = vsub.f32 %v786, 1.0
    %v790 = vsub.f32 %v788, 1.0
    %v791 = vsel %vm781, %v775, %v789
    %v792 = vsel %vm782, %v778, %v790
    %v793 = vpack.c.bf16 %v792, %v791
    %s794 = scalar_lea.vmem [#allocation5], 384
    %v795 = vld [vmem:[%s794] sm:$0xf]
    %v796 = vld [vmem:[%s794 + $0x4] sm:$0xf]
    %v797 = vld [vmem:[%s794 + $0x8] sm:$0xf]
    %v798 = vld [vmem:[%s794 + $0xc] sm:$0xf]
    %v799 = vld [vmem:[%s794 + $0x10] sm:$0xf]
    %v800 = vld [vmem:[%s794 + $0x14] sm:$0xf]
    %v801 = vld [vmem:[%s794 + $0x18] sm:$0xf]
    %v802 = vld [vmem:[%s794 + $0x1c] sm:$0xf]
    %v803 = vld [vmem:[%s794 + $0x20] sm:$0xf]
    %v804 = vld [vmem:[%s794 + $0x24] sm:$0xf]
    %v805 = vld [vmem:[%s794 + $0x28] sm:$0xf]
    %v806 = vld [vmem:[%s794 + $0x2c] sm:$0xf]
    %v807 = vld [vmem:[%s794 + $0x30] sm:$0xf]
    %v808 = vld [vmem:[%s794 + $0x34] sm:$0xf]
    %v809 = vld [vmem:[%s794 + $0x38] sm:$0xf]
    %v810 = vld [vmem:[%s794 + $0x3c] sm:$0xf]
    %v811 = vld [vmem:[#allocation7 + $0x6] sm:$0x1]
    %v812 = vlaneseq
    %v813 = vshrl.u32 %v812, 7
    %v814 = vsub.s32 0, %v813
    %v815 = vrot.slane %v811, %v814
    %v832 = vunpack.c.l.b16 %v795
    %v833 = vunpack.c.l.b16 %v796
    %v834 = vunpack.c.l.b16 %v797
    %v835 = vunpack.c.l.b16 %v798
    %v836 = vunpack.c.l.b16 %v799
    %v837 = vunpack.c.l.b16 %v800
    %v838 = vunpack.c.l.b16 %v801
    %v839 = vunpack.c.l.b16 %v802
    %v840 = vunpack.c.l.b16 %v803
    %v841 = vunpack.c.l.b16 %v804
    %v842 = vunpack.c.l.b16 %v805
    %v843 = vunpack.c.l.b16 %v806
    %v844 = vunpack.c.l.b16 %v807
    %v845 = vunpack.c.l.b16 %v808
    %v846 = vunpack.c.l.b16 %v809
    %v847 = vunpack.c.l.b16 %v810
    %v848 = vpack.c.b16 %v833, %v832
    %v849 = vpack.c.b16 %v835, %v834
    %v850 = vpack.c.b16 %v837, %v836
    %v851 = vpack.c.b16 %v839, %v838
    %v852 = vpack.c.b16 %v841, %v840
    %v853 = vpack.c.b16 %v843, %v842
    %v854 = vpack.c.b16 %v845, %v844
    %v855 = vpack.c.b16 %v847, %v846
    %864 = vmatprep.subr.bf16.mxu0 0
    %865 = vmatpush1.bf16.msra.mxu0 %v848
    %866 = vmatprep.subr.bf16.mxu0 0
    %867 = vmatpush1.bf16.msra.mxu0 %v849
    %868 = vmatprep.subr.bf16.mxu0 0
    %869 = vmatpush1.bf16.msra.mxu0 %v850
    %870 = vmatprep.subr.bf16.mxu0 0
    %871 = vmatpush1.bf16.msra.mxu0 %v851
    %872 = vmatprep.subr.bf16.mxu0 0
    %873 = vmatpush1.bf16.msra.mxu0 %v852
    %874 = vmatprep.subr.bf16.mxu0 0
    %875 = vmatpush1.bf16.msra.mxu0 %v853
    %876 = vmatprep.subr.bf16.mxu0 0
    %877 = vmatpush1.bf16.msra.mxu0 %v854
    %878 = vmatprep.subr.bf16.mxu0 0
    %879 = vmatpush1.bf16.msra.mxu0 %v855
    %880 = vmatprep.subr.bf16.mxu0 0
    %881 = vmatpush1.bf16.msra.mxu0 0
    %882 = vmatprep.subr.bf16.mxu0 0
    %883 = vmatpush1.bf16.msra.mxu0 0
    %884 = vmatprep.subr.bf16.mxu0 0
    %885 = vmatpush1.bf16.msra.mxu0 0
    %886 = vmatprep.subr.bf16.mxu0 0
    %887 = vmatpush1.bf16.msra.mxu0 0
    %888 = vmatprep.subr.bf16.mxu0 0
    %889 = vmatpush1.bf16.msra.mxu0 0
    %890 = vmatprep.subr.bf16.mxu0 0
    %891 = vmatpush1.bf16.msra.mxu0 0
    %892 = vmatprep.subr.bf16.mxu0 0
    %893 = vmatpush1.bf16.msra.mxu0 0
    %894 = vmatprep.subr.bf16.mxu0 0
    %895 = vmatpush1.bf16.msra.mxu0 0
    %896 = vmatprep.mubr.bf16.mxu0 0
    %897 = vmatmul.mubr.bf16.gmra.mrb[0].mxu0 %v793
    %v898 = vpop.f32.mrb[0].mxu0
    %v899 = vadd.f32 %v815, %v898
    %v900 = vpop.f32.mrb[0].mxu0
    %v901 = vpop.f32.mrb[0].mxu0
    %v902 = vadd.f32 %v815, %v901
    %v903 = vpop.f32.mrb[0].mxu0
    %904 = vdwg.mxu0
    %vm905 = vcmp.gt.f32.partialorder %v899, 0.0
    %vm906 = vcmp.gt.f32.partialorder %v902, 0.0
    %v907 = vmin.f32 %v899, 0.0
    %v908 = vmin.f32 %v902, 0.0
    %v909 = vmul.f32 %v907, 1.442695
    %v910 = vpow.pop %v909
    %v911 = vmul.f32 %v908, 1.442695
    %v912 = vpow.pop %v911
    %v913 = vsub.f32 %v910, 1.0
    %v914 = vsub.f32 %v912, 1.0
    %v915 = vsel %vm905, %v899, %v913
    %v916 = vsel %vm906, %v902, %v914
    %v917 = vpack.c.bf16 %v916, %v915
    %s918 = scalar_lea.vmem [#allocation5], 448
    %v919 = vld [vmem:[%s918] sm:$0xf]
    %v920 = vld [vmem:[%s918 + $0x4] sm:$0xf]
    %v921 = vld [vmem:[%s918 + $0x8] sm:$0xf]
    %v922 = vld [vmem:[%s918 + $0xc] sm:$0xf]
    %v923 = vld [vmem:[%s918 + $0x10] sm:$0xf]
    %v924 = vld [vmem:[%s918 + $0x14] sm:$0xf]
    %v925 = vld [vmem:[%s918 + $0x18] sm:$0xf]
    %v926 = vld [vmem:[%s918 + $0x1c] sm:$0xf]
    %v927 = vld [vmem:[%s918 + $0x20] sm:$0xf]
    %v928 = vld [vmem:[%s918 + $0x24] sm:$0xf]
    %v929 = vld [vmem:[%s918 + $0x28] sm:$0xf]
    %v930 = vld [vmem:[%s918 + $0x2c] sm:$0xf]
    %v931 = vld [vmem:[%s918 + $0x30] sm:$0xf]
    %v932 = vld [vmem:[%s918 + $0x34] sm:$0xf]
    %v933 = vld [vmem:[%s918 + $0x38] sm:$0xf]
    %v934 = vld [vmem:[%s918 + $0x3c] sm:$0xf]
    %v935 = vld [vmem:[#allocation7 + $0x7] sm:$0x1]
    %v936 = vlaneseq
    %v937 = vshrl.u32 %v936, 7
    %v938 = vsub.s32 0, %v937
    %v939 = vrot.slane %v935, %v938
    %v956 = vunpack.c.l.b16 %v919
    %v957 = vunpack.c.l.b16 %v920
    %v958 = vunpack.c.l.b16 %v921
    %v959 = vunpack.c.l.b16 %v922
    %v960 = vunpack.c.l.b16 %v923
    %v961 = vunpack.c.l.b16 %v924
    %v962 = vunpack.c.l.b16 %v925
    %v963 = vunpack.c.l.b16 %v926
    %v964 = vunpack.c.l.b16 %v927
    %v965 = vunpack.c.l.b16 %v928
    %v966 = vunpack.c.l.b16 %v929
    %v967 = vunpack.c.l.b16 %v930
    %v968 = vunpack.c.l.b16 %v931
    %v969 = vunpack.c.l.b16 %v932
    %v970 = vunpack.c.l.b16 %v933
    %v971 = vunpack.c.l.b16 %v934
    %v972 = vpack.c.b16 %v957, %v956
    %v973 = vpack.c.b16 %v959, %v958
    %v974 = vpack.c.b16 %v961, %v960
    %v975 = vpack.c.b16 %v963, %v962
    %v976 = vpack.c.b16 %v965, %v964
    %v977 = vpack.c.b16 %v967, %v966
    %v978 = vpack.c.b16 %v969, %v968
    %v979 = vpack.c.b16 %v971, %v970
    %988 = vmatprep.subr.bf16.mxu0 0
    %989 = vmatpush1.bf16.msra.mxu0 %v972
    %990 = vmatprep.subr.bf16.mxu0 0
    %991 = vmatpush1.bf16.msra.mxu0 %v973
    %992 = vmatprep.subr.bf16.mxu0 0
    %993 = vmatpush1.bf16.msra.mxu0 %v974
    %994 = vmatprep.subr.bf16.mxu0 0
    %995 = vmatpush1.bf16.msra.mxu0 %v975
    %996 = vmatprep.subr.bf16.mxu0 0
    %997 = vmatpush1.bf16.msra.mxu0 %v976
    %998 = vmatprep.subr.bf16.mxu0 0
    %999 = vmatpush1.bf16.msra.mxu0 %v977
    %1000 = vmatprep.subr.bf16.mxu0 0
    %1001 = vmatpush1.bf16.msra.mxu0 %v978
    %1002 = vmatprep.subr.bf16.mxu0 0
    %1003 = vmatpush1.bf16.msra.mxu0 %v979
    %1004 = vmatprep.subr.bf16.mxu0 0
    %1005 = vmatpush1.bf16.msra.mxu0 0
    %1006 = vmatprep.subr.bf16.mxu0 0
    %1007 = vmatpush1.bf16.msra.mxu0 0
    %1008 = vmatprep.subr.bf16.mxu0 0
    %1009 = vmatpush1.bf16.msra.mxu0 0
    %1010 = vmatprep.subr.bf16.mxu0 0
    %1011 = vmatpush1.bf16.msra.mxu0 0
    %1012 = vmatprep.subr.bf16.mxu0 0
    %1013 = vmatpush1.bf16.msra.mxu0 0
    %1014 = vmatprep.subr.bf16.mxu0 0
    %1015 = vmatpush1.bf16.msra.mxu0 0
    %1016 = vmatprep.subr.bf16.mxu0 0
    %1017 = vmatpush1.bf16.msra.mxu0 0
    %1018 = vmatprep.subr.bf16.mxu0 0
    %1019 = vmatpush1.bf16.msra.mxu0 0
    %1020 = vmatprep.mubr.bf16.mxu0 0
    %1021 = vmatmul.mubr.bf16.gmra.mrb[0].mxu0 %v917
    %v1022 = vpop.f32.mrb[0].mxu0
    %v1023 = vadd.f32 %v939, %v1022
    %v1024 = vpop.f32.mrb[0].mxu0
    %v1025 = vpop.f32.mrb[0].mxu0
    %v1026 = vadd.f32 %v939, %v1025
    %v1027 = vpop.f32.mrb[0].mxu0
    %1028 = vdwg.mxu0
    %1029 = vst [vmem:[#allocation8] sm:$0xff] %v1023
    %1030 = vst [vmem:[#allocation8 + $0x8] sm:$0xff] %v1026
    // Predicated region
    $region26: #{tpu_custom_call.1} parent=1 // pred_check
      _
    $region27: #{tpu_custom_call.1} parent=1 // pred_check_branch
      %1032 = sbr.rel (0) target = $region29
    $region28: #{tpu_custom_call.1} parent=1 // pred_region
      %s1034 = ssub.s32 256, 256
      %1035 = vsyncadd [#allocation4], %s1034
      %s1036 = sshll.u32 [#allocation8], 4
      %s1037 = int_to_ptr.vmem [resolvable:$true] %s1036
      %1042 = dma.vmem_to_hbm [thread:$0]  %s1037, 256, %s3, [#allocation4], 128, 128, 8
    $region29: #{tpu_custom_call.1} parent=1 // pred_fallthru
      _
    // Predicated region
    $region30: #{tpu_custom_call.1} parent=1 // pred_check
      _
    $region31: #{tpu_custom_call.1} parent=1 // pred_check_branch
      %1044 = sbr.rel (0) target = $region33
    $region32: #{tpu_custom_call.1} parent=1 // pred_region
      %1045 = dma.done [#allocation4], 256
    $region33: #{tpu_custom_call.1} parent=1 // pred_fallthru
      _
    %1046 = vsyncpa [#allocation3], 1
    %1047 = vsyncpa [#allocation6], 1
    %1048 = vsyncpa [#allocation4], 1

</llo_original>
